<compile_context>
chip_gen: v7x
topology: tpu7x:2x2x1
jax: 0.10.0
libtpu: 0.0.40
codegen_flags: <defaults>
</compile_context>

<pallas_src>
import jax
import jax.numpy as jnp
from jax.experimental import pallas as pl
from jax.experimental.pallas import tpu as pltpu


def _round_up(x, m):
    return ((x + m - 1) // m) * m


def _cdiv(a, b):
    return (a + b - 1) // b


def _onehot_gather_kernel(ids_ref, emb_ref, out_ref):
    # ids_ref: (tb, 1) int32 token ids for this block
    # emb_ref: (V, td) VMEM-resident embedding table tile
    # out_ref: (tb, td) gathered rows
    v = emb_ref.shape[0]
    ids = jnp.clip(ids_ref[...], 0, v - 1)               # in-kernel clamp (VPU)
    tb = ids.shape[0]
    vocab_iota = jax.lax.broadcasted_iota(jnp.int32, (tb, v), 1)
    onehot = (ids == vocab_iota).astype(emb_ref.dtype)   # (tb, V) fused cmp+cast
    out_ref[...] = jnp.dot(
        onehot, emb_ref[...], preferred_element_type=jnp.float32
    ).astype(out_ref.dtype)                               # MXU gather


def embedding_lookup(ids, emb_table, *, token_block=None):
    """Pallas embedding lookup.

    ids:       int array of shape (B, S)   (out-of-range ids are clamped)
    emb_table: float array of shape (V, D) (D on the lane axis)
    returns:   array of shape (B, S, D), dtype of emb_table
    """
    B, S = ids.shape
    V, D = emb_table.shape
    N = B * S
    itemsize = jnp.dtype(emb_table.dtype).itemsize

    # ---- generation-aware VMEM budget (v7x: 64 MiB/TC, v5e/v6e: 128 MiB) ----
    try:
        phys_vmem = int(pltpu.get_tpu_info().vmem_capacity_bytes)
    except Exception:
        phys_vmem = 64 << 20                      # conservative fallback
    vmem_budget = max(16 << 20, phys_vmem - (16 << 20))   # leave headroom

    # ---- table tiling along D (only if the full table can't stay resident) --
    table_budget = vmem_budget // 2               # keep >= half for out/ids/tmp
    if V * D * itemsize <= table_budget or D % 128 != 0:
        td = D                                    # full table resident
        table_bufs = 1                            # constant index_map -> single-buffer
    else:
        td = max(128, ((table_budget // (2 * V * itemsize)) // 128) * 128)
        td = min(td, D)
        table_bufs = 2                            # table block changes across D-tiles
    num_d_tiles = _cdiv(D, td)

    # ---- size the token block from the remaining VMEM budget ----------------
    remaining = max(vmem_budget - table_bufs * V * td * itemsize, 1 << 20)
    per_token = (2 * td * itemsize      # double-buffered output block
                 + 2 * 128 * 4          # (tb,1) ids block, lane-padded, x2 bufs
                 + 8 * V)               # one-hot (f32) + iota (i32) intermediates
    tb = (remaining // per_token) // 8 * 8
    tb = int(max(8, min(tb, 4096)))
    if token_block is not None:
        tb = int(max(8, min(tb, _round_up(token_block, 8))))
    tb = min(tb, _round_up(N, 8))
    if N >= 16:                                   # guarantee >=2 blocks for megacore
        tb = min(tb, _round_up(_cdiv(N, 2), 8))

    n_pad = _round_up(N, tb)
    num_blocks = n_pad // tb

    flat_ids = ids.reshape(N).astype(jnp.int32)
    if n_pad != N:
        flat_ids = jnp.pad(flat_ids, (0, n_pad - N))   # pad ids -> row 0 (clamped)
    ids_col = flat_ids.reshape(n_pad, 1)

    # ---- VMEM limit: what this kernel actually needs, capped by the budget --
    needed = (table_bufs * V * td * itemsize
              + 2 * (tb * td * itemsize + tb * 128 * 4)
              + tb * V * 8
              + (2 << 20))                        # margin for compiler scratch
    vmem_limit = int(min(vmem_budget, max(needed, 8 << 20)))

    cost = pl.CostEstimate(
        flops=2 * n_pad * V * D,
        transcendentals=0,
        bytes_accessed=V * D * itemsize + n_pad * D * itemsize + n_pad * 4,
    )

    table_spec_kwargs = {}
    if table_bufs == 1:
        # Constant index_map -> default double-buffer would just waste VMEM.
        table_spec_kwargs["pipeline_mode"] = pl.Buffered(1)

    grid_spec = pltpu.PrefetchScalarGridSpec(
        num_scalar_prefetch=0,
        grid=(num_blocks, num_d_tiles),
        in_specs=[
            # Per-block token ids, (tb, 1).
            pl.BlockSpec((tb, 1), lambda i, j: (i, 0)),
            # Table tile (V, td); resident (constant map) when num_d_tiles == 1.
            pl.BlockSpec((V, td), lambda i, j: (0, j), **table_spec_kwargs),
        ],
        out_specs=pl.BlockSpec((tb, td), lambda i, j: (i, j)),
    )

    out_flat = pl.pallas_call(
        _onehot_gather_kernel,
        out_shape=jax.ShapeDtypeStruct((n_pad, D), emb_table.dtype),
        grid_spec=grid_spec,
        compiler_params=pltpu.CompilerParams(
            dimension_semantics=("parallel", "arbitrary"),
            vmem_limit_bytes=vmem_limit,
        ),
        cost_estimate=cost,
    )(ids_col, emb_table)

    return out_flat[:N].reshape(B, S, D)


if __name__ == "__main__":
    # Small shapes consistent with the module: vocab V, embed dim D, batch, seq.
    V, D = 32, 128
    B, S = 2, 8

    key = jax.random.PRNGKey(0)
    k_emb, k_ids = jax.random.split(key)

    # Deterministic "torch.randn((V, D))"-style embedding weights.
    emb_table = jax.random.normal(k_emb, (V, D), dtype=jnp.float32)
    # Deterministic token ids in [0, V).
    sentence = jax.random.randint(k_ids, (B, S), 0, V, dtype=jnp.int32)

    out = embedding_lookup(sentence, emb_table)
    out = jax.block_until_ready(out)

    # Correctness check against plain JAX gather (nn.Embedding semantics).
    ref = jnp.take(emb_table, sentence, axis=0)
    assert out.shape == (B, S, D), out.shape
    assert jnp.allclose(out, ref), "Pallas embedding lookup mismatch"

    print("KERNEL_OK")
</pallas_src>

<mosaic_0001>
module attributes {stable_mosaic.version = 11 : i64} {
  func.func @_onehot_gather_kernel(%arg0: i32, %arg1: i32, %arg2: memref<8x1xi32, #tpu.memory_space<vmem>>, %arg3: memref<32x128xf32, #tpu.memory_space<vmem>>, %arg4: memref<8x128xf32, #tpu.memory_space<vmem>>) attributes {dimension_semantics = [#tpu.dimension_semantics<parallel>, #tpu.dimension_semantics<arbitrary>], iteration_bounds = array<i64: 2, 1>, scalar_prefetch = 0 : i64, scratch_operands = 0 : i64, tpu.core_type = #tpu.core_type<tc>, window_params = [{transform_indices = @transform_0, window_bounds = array<i64: 8, 1>}, {pipeline_mode = #tpu.pipeline_mode<synchronous>, transform_indices = @transform_1, window_bounds = array<i64: 32, 128>}, {transform_indices = @transform_2, window_bounds = array<i64: 8, 128>}]} {
    %c0 = arith.constant 0 : index
    %c0_0 = arith.constant 0 : index
    %0 = vector.load %arg2[%c0, %c0_0] : memref<8x1xi32, #tpu.memory_space<vmem>>, vector<8x1xi32>
    %c0_i32 = arith.constant 0 : i32
    %c31_i32 = arith.constant 31 : i32
    %1 = vector.broadcast %c0_i32 : i32 to vector<8x1xi32>
    %2 = arith.maxsi %1, %0 : vector<8x1xi32>
    %3 = vector.broadcast %c31_i32 : i32 to vector<8x1xi32>
    %4 = arith.minsi %3, %2 : vector<8x1xi32>
    %5 = tpu.iota {dimensions = array<i32: 1>} : vector<8x32xi32>
    %6 = vector.broadcast %4 : vector<8x1xi32> to vector<8x32xi32>
    %7 = arith.cmpi eq, %6, %5 : vector<8x32xi32>
    %8 = arith.extui %7 : vector<8x32xi1> to vector<8x32xi32>
    %9 = arith.sitofp %8 : vector<8x32xi32> to vector<8x32xf32>
    %c0_1 = arith.constant 0 : index
    %c0_2 = arith.constant 0 : index
    %10 = vector.load %arg3[%c0_1, %c0_2] : memref<32x128xf32, #tpu.memory_space<vmem>>, vector<32x128xf32>
    %cst = arith.constant dense<0.000000e+00> : vector<8x128xf32>
    %11 = tpu.matmul %9, %10, %cst {dimension_numbers = #tpu.dot_dimension_numbers<[1], [0], [0], [1], [0, 0, 1, 1], [], []>} : vector<8x32xf32>, vector<32x128xf32>, vector<8x128xf32> -> vector<8x128xf32>
    %c0_3 = arith.constant 0 : index
    %c0_4 = arith.constant 0 : index
    %12 = vector.load %arg4[%c0_3, %c0_4] : memref<8x128xf32, #tpu.memory_space<vmem>>, vector<8x128xf32>
    tpu.vector_store %arg4[%c0_3, %c0_4], %11 {strides = array<i32>} : memref<8x128xf32, #tpu.memory_space<vmem>>, vector<8x128xf32>,
    return
  }
  func.func @transform_0(%arg0: i32, %arg1: i32) -> (i32, i32) {
    %c0_i32 = arith.constant 0 : i32
    %c0_i32_0 = arith.constant 0 : i32
    return %arg0, %c0_i32 : i32, i32
  }
  func.func @transform_1(%arg0: i32, %arg1: i32) -> (i32, i32) {
    %c0_i32 = arith.constant 0 : i32
    %c0_i32_0 = arith.constant 0 : i32
    return %c0_i32, %arg1 : i32, i32
  }
  func.func @transform_2(%arg0: i32, %arg1: i32) -> (i32, i32) {
    %c0_i32 = arith.constant 0 : i32
    return %arg0, %arg1 : i32, i32
  }
}

</mosaic_0001>

<llo_original>
// kernel: tpu_custom_call.1
$region0: #{tpu_custom_call.1}
  #allocation0 [shape = 'u32[]', space=smem, size = 0x4, offset = 0x4, fixed_abs, tag = 'smem constant byte address 0x4 - core index']
  #allocation1 [shape = 'u32[144,128]{1,0:T(1,128)}', space=vmem, size = 0x12000, scoped, tag = 'internal scratch']
  %s0 = inlined_call_operand.vmem [shape: s32[16,1], index: 0, kind: input, shape index: {}]
  %s1 = inlined_call_operand.hbm [shape: f32[32,128], index: 1, kind: input, shape index: {}]
  %s2 = inlined_call_operand.hbm [shape: f32[16,128], index: 2, kind: output, shape index: {}]
  %s3 = sld [smem:[#allocation0]]
  $region45: #{tpu_custom_call.1} parent=0
    _
  %s5 = ssub.s32 1, %s3
  %s6 = scalar_select 0, %s5, %s3
  $region1: #{tpu_custom_call.1} parent=0
    #allocation2 [shape = 'u8[16384]{0}', space=vmem, size = 0x4000, scoped, tag = 'input window, operand 1, single buffered']
    #allocation3 [shape = 's32[2]{0}', space=sflag, size = 0x8, scoped, tag = 'scoped memory for tpu_custom_call.1']
    #allocation4 [shape = 's32[2]{0}', space=sflag, size = 0x8, scoped, tag = 'scoped memory for tpu_custom_call.1']
    #allocation5 [shape = 'u8[8192]{0}', space=vmem, size = 0x2000, scoped, tag = 'output window, operand 0']
    %7 = vsyncpa [#allocation3], 0
    %8 = vsyncpa [#allocation4], 0
    %s9 = scalar_lea.sflag [#allocation4], 1
    %10 = vsyncpa %s9, 0
    loop: start=0, step=1, limit=4
    $region2: #{tpu_custom_call.1} parent=1 // loop_pre_header
      _
    $region3: #{tpu_custom_call.1} parent=1 // loop_header
      %s12 = sphi 0, %s16
      %p13 = scmp.ge.s32.totalorder %s12, 4
      %s19 = sphi 0, %s31
      %s20 = sphi 0, %s27
      %s21 = sphi 0, %s19
      %s22 = sphi 0, %s20
      %s23 = sphi 0, %s21
      %s24 = sphi 0, %s22
      %s34 = sphi 0, %s36
      %s37 = sphi 0, %s34
      %s38 = sphi 0, %s37
      %s54 = sphi 0, %s38
      %s60 = sphi 0, %s62
      %s63 = sphi 0, %s60
      %s64 = sphi 0, %s63
      %s80 = sphi 0, %s64
      %s88 = sphi 0, %s90
      %s91 = sphi 0, %s88
      %s92 = sphi 0, %s91
      %s108 = sphi 0, %s92
    $region4: #{tpu_custom_call.1} parent=1 // loop_header_branch
      %15 = sbr.rel (%p13) target = $region8
    $region5: #{tpu_custom_call.1} parent=1 // loop_body
      %s17 = ssub.s32 %s12, 1
      %s18 = ssub.s32 %s12, 2
      %s25 = sadd.s32 1, %s20
      %p26 = scmp.ge.s32.totalorder %s25, 1
      %s27 = scalar_select %p26, 0, %s25
      %s28 = sadd.s32 1, %s19
      %s29 = scalar_select %p26, %s28, %s19
      %p30 = scmp.ge.s32.totalorder %s29, 2
      %s31 = scalar_select %p30, 0, %s29
      %s32 = ssub.s32 %s19, %s31
      %p33 = scmp.eq.s32.totalorder %s32, 0
      %s35 = sadd.s32 %s34, 1
      %s36 = scalar_select %p33, %s34, %s35
      %p39 = pneg %p33
      %p40 = scmp.eq.s32.totalorder %s12, 1
      %p41 = por %p39, %p40
      %p42 = scmp.ne.s32.totalorder %s34, %s37
      %p43 = scmp.eq.s32.totalorder %s12, 0
      %p44 = por %p42, %p43
      %p45 = scmp.ne.s32.totalorder %s34, %s37
      %p46 = scmp.eq.s32.totalorder %s17, 1
      %p47 = por %p45, %p46
      %p48 = scmp.ne.s32.totalorder %s37, %s38
      %p49 = scmp.eq.s32.totalorder %s17, 0
      %p50 = por %p48, %p49
      %p51 = scmp.ne.s32.totalorder %s37, %s38
      %p52 = scmp.eq.s32.totalorder %s18, 1
      %p53 = por %p51, %p52
      %p55 = scmp.ne.s32.totalorder %s38, %s54
      %p56 = scmp.eq.s32.totalorder %s18, 0
      %p57 = por %p55, %p56
      %s58 = ssub.s32 %s20, %s27
      %p59 = scmp.eq.s32.totalorder %s58, 0
      %s61 = sadd.s32 %s60, 1
      %s62 = scalar_select %p59, %s60, %s61
      %p65 = pneg %p59
      %p66 = scmp.eq.s32.totalorder %s12, 1
      %p67 = por %p65, %p66
      %p68 = scmp.ne.s32.totalorder %s60, %s63
      %p69 = scmp.eq.s32.totalorder %s12, 0
      %p70 = por %p68, %p69
      %p71 = scmp.ne.s32.totalorder %s60, %s63
      %p72 = scmp.eq.s32.totalorder %s17, 1
      %p73 = por %p71, %p72
      %p74 = scmp.ne.s32.totalorder %s63, %s64
      %p75 = scmp.eq.s32.totalorder %s17, 0
      %p76 = por %p74, %p75
      %p77 = scmp.ne.s32.totalorder %s63, %s64
      %p78 = scmp.eq.s32.totalorder %s18, 1
      %p79 = por %p77, %p78
      %p81 = scmp.ne.s32.totalorder %s64, %s80
      %p82 = scmp.eq.s32.totalorder %s18, 0
      %p83 = por %p81, %p82
      %s84 = ssub.s32 %s19, %s31
      %s85 = ssub.s32 %s20, %s27
      %s86 = sor.u32 %s84, %s85
      %p87 = scmp.eq.s32.totalorder %s86, 0
      %s89 = sadd.s32 %s88, 1
      %s90 = scalar_select %p87, %s88, %s89
      %p93 = pneg %p87
      %p94 = scmp.eq.s32.totalorder %s12, 1
      %p95 = por %p93, %p94
      %p96 = scmp.ne.s32.totalorder %s88, %s91
      %p97 = scmp.eq.s32.totalorder %s12, 0
      %p98 = por %p96, %p97
      %p99 = scmp.ne.s32.totalorder %s88, %s91
      %p100 = scmp.eq.s32.totalorder %s17, 1
      %p101 = por %p99, %p100
      %p102 = scmp.ne.s32.totalorder %s91, %s92
      %p103 = scmp.eq.s32.totalorder %s17, 0
      %p104 = por %p102, %p103
      %p105 = scmp.ne.s32.totalorder %s91, %s92
      %p106 = scmp.eq.s32.totalorder %s18, 1
      %p107 = por %p105, %p106
      %p109 = scmp.ne.s32.totalorder %s92, %s108
      %p110 = scmp.eq.s32.totalorder %s18, 0
      %p111 = por %p109, %p110
      %p112 = scmp.le.s32.totalorder 1, %s12
      %p113 = scmp.lt.s32.totalorder %s12, 3
      %p114 = pnand %p112, %p113
      %p115 = pneg %p114
      // Predicated region
      $region9: #{tpu_custom_call.1} parent=5 // pred_check
        _
      $region10: #{tpu_custom_call.1} parent=5 // pred_check_branch
        %117 = sbr.rel (%p114) target = $region12
      $region11: #{tpu_custom_call.1} parent=5 // pred_region
        %s118 = ssub.s32 %s12, 1
        // Predicated region
        $region13: #{tpu_custom_call.1} parent=11 // pred_check
          %p119 = pneg %p76
        $region14: #{tpu_custom_call.1} parent=11 // pred_check_branch
          %121 = sbr.rel (%p119) target = $region16
        $region15: #{tpu_custom_call.1} parent=11 // pred_region
          %s123 = ssub.s32 512, 512
          %124 = vsyncadd [#allocation3], %s123
          %s125 = smul.addr %s22, 128
          %s126 = scalar_lea.hbm %s1, %s125
          %s127 = sshll.u32 [#allocation2], 4
          %s128 = int_to_ptr.vmem [resolvable:$true] %s127
          %133 = dma.hbm_to_vmem [thread:$0]  %s126, 512, %s128, [#allocation3], 128, 128, 8
        $region16: #{tpu_custom_call.1} parent=11 // pred_fallthru
          _
      $region12: #{tpu_custom_call.1} parent=5 // pred_fallthru
        _
      %p134 = scmp.lt.s32.totalorder %s12, 2
      // Predicated region
      $region17: #{tpu_custom_call.1} parent=5 // pred_check
        %p135 = pneg %p134
      $region18: #{tpu_custom_call.1} parent=5 // pred_check_branch
        %137 = sbr.rel (%p135) target = $region20
      $region19: #{tpu_custom_call.1} parent=5 // pred_region
        // Predicated region
        $region21: #{tpu_custom_call.1} parent=19 // pred_check
          %p138 = pneg %p44
        $region22: #{tpu_custom_call.1} parent=19 // pred_check_branch
          %140 = sbr.rel (%p138) target = $region24
        $region23: #{tpu_custom_call.1} parent=19 // pred_region
          %p141 = scmp.lt.s32.totalorder %s19, 1
          %s142 = scalar_select %p141, %s19, 1
          %s143 = smul.addr %s142, 8
          %s144 = scalar_lea.vmem %s0, %s143
        $region24: #{tpu_custom_call.1} parent=19 // pred_fallthru
          _
      $region20: #{tpu_custom_call.1} parent=5 // pred_fallthru
        _
      %p145 = scmp.le.s32.totalorder 1, %s12
      %p146 = scmp.lt.s32.totalorder %s12, 3
      %p147 = pnand %p145, %p146
      %p148 = pneg %p147
      // Predicated region
      $region25: #{tpu_custom_call.1} parent=5 // pred_check
        _
      $region26: #{tpu_custom_call.1} parent=5 // pred_check_branch
        %150 = sbr.rel (%p147) target = $region28
      $region27: #{tpu_custom_call.1} parent=5 // pred_region
        %s151 = ssub.s32 %s12, 1
        // Predicated region
        $region29: #{tpu_custom_call.1} parent=27 // pred_check
          %p152 = pneg %p76
        $region30: #{tpu_custom_call.1} parent=27 // pred_check_branch
          %154 = sbr.rel (%p152) target = $region32
        $region31: #{tpu_custom_call.1} parent=27 // pred_region
          %155 = dma.done [#allocation3], 512
        $region32: #{tpu_custom_call.1} parent=27 // pred_fallthru
          _
        %p156 = scmp.lt.s32.totalorder %s21, 1
        %s157 = scalar_select %p156, %s21, 1
        %s158 = smul.addr %s157, 8
        %s159 = scalar_lea.vmem %s0, %s158
        %p160 = pneg %p50
        %p161 = pneg %p47
        %p162 = pneg %p76
        %p163 = pneg %p73
        %p164 = pneg %p104
        %p165 = pneg %p101
        %s166 = sand.u32 %s91, 1
        %s167 = scalar_lea.sflag [#allocation4], %s166
        %s168 = sand.u32 %s91, 1
        %s169 = smul.addr %s168, 8
        %s170 = scalar_lea.vmem [#allocation5], %s169
        %p171 = scmp.lt.s32.totalorder %s21, 1
        %s172 = scalar_select %p171, %s21, 1
        %s173 = smul.addr %s172, 8
        %s174 = scalar_lea.vmem %s0, %s173
        %v175 = vld [vmem:[%s174] sm:$0xff]
        %vm176 = vcmp.gt.s32.totalorder %v175, 0
        %v177 = vsel %vm176, %v175, 0
        %vm178 = vcmp.lt.s32.totalorder %v177, 31
        %v179 = vsel %vm178, %v177, 31
        %v180 = vlaneseq
        %v181 = vand.u32 %v180, 127
        %182 = vset.pattern.permute.xlu0 0
        %183 = vperm.xlu0 %182, %v179
        %v184 = vpop.permute.xlu0 %183
        %vm185 = vcmp.eq.s32.totalorder %v184, %v181
        %v186 = vsel %vm185, 1, 0
        %v187 = vcvt.s32.f32 %v186
        %v188 = vld [vmem:[#allocation2] sm:$0xff]
        %v189 = vld [vmem:[#allocation2 + $0x8] sm:$0xff]
        %v190 = vld [vmem:[#allocation2 + $0x10] sm:$0xff]
        %v191 = vld [vmem:[#allocation2 + $0x18] sm:$0xff]
        %vm192 = vcmask 261120
        %v194 = vsel %vm192, %v187, 0
        %196 = vmatprep.subr.mxu0 0.0
        %197 = vmatpush1.msra.mxu0 %v188
        %198 = vmatprep.subr.mxu0 0.0
        %199 = vmatpush1.msra.mxu0 %v189
        %200 = vmatprep.subr.mxu0 0.0
        %201 = vmatpush1.msra.mxu0 %v190
        %202 = vmatprep.subr.mxu0 0.0
        %203 = vmatpush1.msra.mxu0 %v191
        %204 = vmatprep.subr.mxu0 0.0
        %205 = vmatpush1.msra.mxu0 0.0
        %206 = vmatprep.subr.mxu0 0.0
        %207 = vmatpush1.msra.mxu0 0.0
        %208 = vmatprep.subr.mxu0 0.0
        %209 = vmatpush1.msra.mxu0 0.0
        %210 = vmatprep.subr.mxu0 0.0
        %211 = vmatpush1.msra.mxu0 0.0
        %212 = vmatprep.subr.mxu0 0.0
        %213 = vmatpush1.msra.mxu0 0.0
        %214 = vmatprep.subr.mxu0 0.0
        %215 = vmatpush1.msra.mxu0 0.0
        %216 = vmatprep.subr.mxu0 0.0
        %217 = vmatpush1.msra.mxu0 0.0
        %218 = vmatprep.subr.mxu0 0.0
        %219 = vmatpush1.msra.mxu0 0.0
        %220 = vmatprep.subr.mxu0 0.0
        %221 = vmatpush1.msra.mxu0 0.0
        %222 = vmatprep.subr.mxu0 0.0
        %223 = vmatpush1.msra.mxu0 0.0
        %224 = vmatprep.subr.mxu0 0.0
        %225 = vmatpush1.msra.mxu0 0.0
        %226 = vmatprep.subr.mxu0 0.0
        %227 = vmatpush1.msra.mxu0 0.0
        %228 = vmatprep.subr.mxu0 0.0
        %229 = vmatpush1.msra.mxu0 0.0
        %230 = vmatprep.subr.mxu0 0.0
        %231 = vmatpush1.msra.mxu0 0.0
        %232 = vmatprep.subr.mxu0 0.0
        %233 = vmatpush1.msra.mxu0 0.0
        %234 = vmatprep.subr.mxu0 0.0
        %235 = vmatpush1.msra.mxu0 0.0
        %236 = vmatprep.subr.mxu0 0.0
        %237 = vmatpush1.msra.mxu0 0.0
        %238 = vmatprep.subr.mxu0 0.0
        %239 = vmatpush1.msra.mxu0 0.0
        %240 = vmatprep.subr.mxu0 0.0
        %241 = vmatpush1.msra.mxu0 0.0
        %242 = vmatprep.subr.mxu0 0.0
        %243 = vmatpush1.msra.mxu0 0.0
        %244 = vmatprep.subr.mxu0 0.0
        %245 = vmatpush1.msra.mxu0 0.0
        %246 = vmatprep.subr.mxu0 0.0
        %247 = vmatpush1.msra.mxu0 0.0
        %248 = vmatprep.subr.mxu0 0.0
        %249 = vmatpush1.msra.mxu0 0.0
        %250 = vmatprep.subr.mxu0 0.0
        %251 = vmatpush1.msra.mxu0 0.0
        %252 = vmatprep.subr.mxu0 0.0
        %253 = vmatpush1.msra.mxu0 0.0
        %254 = vmatprep.subr.mxu0 0.0
        %255 = vmatpush1.msra.mxu0 0.0
        %256 = vmatprep.subr.mxu0 0.0
        %257 = vmatpush1.msra.mxu0 0.0
        %258 = vmatprep.subr.mxu0 0.0
        %259 = vmatpush1.msra.mxu0 0.0
        %260 = vmatprep.mubr.f32.mxu0 0.0
        %261 = vmatmul.mubr.f32.gmra.mrb[0].mxu0 %v194
        %v262 = vpop.f32.mrb[0].mxu0
        %v263 = vadd.f32 0.0, %v262
        %v264 = vpop.f32.mrb[0].mxu0
        %265 = vdwg.mxu0
        %266 = vst [vmem:[%s170] sm:$0xff] %v263
        %s267 = sand.u32 %s91, 1
        %s268 = scalar_lea.sflag [#allocation4], %s267
        %s269 = sand.u32 %s91, 1
        %s270 = smul.addr %s269, 8
        %s271 = scalar_lea.vmem [#allocation5], %s270
        // Predicated region
        $region33: #{tpu_custom_call.1} parent=27 // pred_check
          %p272 = pneg %p101
        $region34: #{tpu_custom_call.1} parent=27 // pred_check_branch
          %274 = sbr.rel (%p272) target = $region36
        $region35: #{tpu_custom_call.1} parent=27 // pred_region
          %s276 = ssub.s32 128, 128
          %277 = vsyncadd %s268, %s276
          %s278 = sadd.s32 %s22, %s21
          %s279 = smul.addr %s278, 128
          %s280 = scalar_lea.hbm %s2, %s279
          %s282 = sshll.u32 %s271, 4
          %s283 = int_to_ptr.vmem [resolvable:$true] %s282
          %285 = dma.vmem_to_hbm [thread:$0]  %s283, 128, %s280, %s268
        $region36: #{tpu_custom_call.1} parent=27 // pred_fallthru
          _
      $region28: #{tpu_custom_call.1} parent=5 // pred_fallthru
        _
      %p286 = scmp.le.s32.totalorder 2, %s12
      // Predicated region
      $region37: #{tpu_custom_call.1} parent=5 // pred_check
        %p287 = pneg %p286
      $region38: #{tpu_custom_call.1} parent=5 // pred_check_branch
        %289 = sbr.rel (%p287) target = $region40
      $region39: #{tpu_custom_call.1} parent=5 // pred_region
        %s290 = ssub.s32 %s12, 2
        // Predicated region
        $region41: #{tpu_custom_call.1} parent=39 // pred_check
          %p291 = pneg %p107
        $region42: #{tpu_custom_call.1} parent=39 // pred_check_branch
          %293 = sbr.rel (%p291) target = $region44
        $region43: #{tpu_custom_call.1} parent=39 // pred_region
          %s294 = sand.u32 %s92, 1
          %s295 = scalar_lea.sflag [#allocation4], %s294
          %s296 = sand.u32 %s92, 1
          %s297 = smul.addr %s296, 8
          %s298 = scalar_lea.vmem [#allocation5], %s297
          %299 = dma.done %s295, 128
        $region44: #{tpu_custom_call.1} parent=39 // pred_fallthru
          _
      $region40: #{tpu_custom_call.1} parent=5 // pred_fallthru
        _
    $region6: #{tpu_custom_call.1} parent=1 // loop_footer
      %s16 = sadd.s32 1, %s12
    $region7: #{tpu_custom_call.1} parent=1 // loop_footer_branch
      %11 = sbr.rel target = $region3
    $region8: #{tpu_custom_call.1} parent=1 // loop_exit
      _
    %300 = vsyncpa [#allocation3], 1
    %s301 = scalar_lea.sflag [#allocation3], 1
    %302 = vsyncpa %s301, 1
    %303 = vsyncpa [#allocation4], 1
    %s304 = scalar_lea.sflag [#allocation4], 1
    %305 = vsyncpa %s304, 1

</llo_original>
